<compile_context>
chip_gen: v5e
topology: v5e:2x2
jax: 0.10.0
libtpu: 0.0.40
codegen_flags: <defaults>
</compile_context>

<pallas_src>
import jax
import jax.numpy as jnp
import numpy as np
from jax.experimental import pallas as pl
from jax.experimental.pallas import tpu as pltpu

# ---- model hyper-parameters (the "params" object of the PyTorch module) ----
NUM_CLASS = 10
EMB_DIM = 8
COV_DIM = 4
HIDDEN = 32
LAYERS = 2
BATCH = 8
X_FEAT = 1 + COV_DIM                    # raw covariate width of x        (5)
IN_DIM = X_FEAT + EMB_DIM               # LSTM layer-0 input size         (13)
XPAD = HIDDEN                           # per-step covariate slab width   (32)
STATE = 2 * LAYERS * HIDDEN             # packed [h0|h1|c0|c1] width      (128)
CAT_K = STATE + XPAD                    # fused gate-matmul K             (160)
GATES = 4 * HIDDEN                      # gate columns per layer          (128)
HEAD = 128                              # lane-dense head output width

assert X_FEAT <= XPAD


def deepar_kernel(x_ref, state0_ref, gb0_ref, bias_ref, wcat_ref, whead_ref,
                  bhead_ref, state_out_ref, head_ref, carry_ref):
    """One grid step = one DeepAR timestep.

    x_ref      : [1, B, XPAD]      covariates for step t (x in lanes 0:X_FEAT)
    state0_ref : [B, STATE]        packed initial state  [h0|h1|c0|c1]
    gb0_ref    : [B, GATES]        layer-0 gate bias (embedding + b_ih0+b_hh0)
    bias_ref   : [L, 1, GATES]     per-layer gate bias (used for l >= 1)
    wcat_ref   : [L, CAT_K, GATES] bf16 fused gate weights over [state | inp]
    whead_ref  : [STATE, HEAD]     bf16 head weights (mu col 0, presigma col 1)
    bhead_ref  : [1, HEAD]         head bias
    state_out_ref : [B, STATE]     final packed state (written every step)
    head_ref   : [1, B, HEAD]      per-step head slab (mu lane 0, sigma lane 1)
    carry_ref  : [B, STATE] VMEM   state carried across grid steps
    """
    H = HIDDEN
    t = pl.program_id(0)

    @pl.when(t == 0)
    def _():
        carry_ref[...] = state0_ref[...]

    state = carry_ref[...]                                   # [B, STATE] f32
    inp = x_ref[0]                                           # [B, XPAD]  f32

    h_parts, c_parts = [], []
    for l in range(LAYERS):                                  # static unroll
        # gate matmul over [old-state(128) | layer-input(32)]; unused state
        # lanes hit zero weight rows.  bf16 operands, f32 accumulation.
        inp_cat = jnp.concatenate([state, inp], axis=1)      # [B, CAT_K]
        gates = jnp.dot(inp_cat.astype(jnp.bfloat16), wcat_ref[l],
                        preferred_element_type=jnp.float32)  # [B, GATES]
        gates = gates + (gb0_ref[...] if l == 0 else bias_ref[l])
        # gate columns pre-permuted to (i, f, o, g)
        sig = jax.nn.sigmoid(gates[:, :3 * H])
        g_g = jnp.tanh(gates[:, 3 * H:])
        i_g, f_g, o_g = sig[:, :H], sig[:, H:2 * H], sig[:, 2 * H:3 * H]
        c_prev = state[:, (LAYERS + l) * H:(LAYERS + l + 1) * H]
        c_new = f_g * c_prev + i_g * g_g
        h_new = o_g * jnp.tanh(c_new)
        h_parts.append(h_new)
        c_parts.append(c_new)
        inp = h_new                                          # next layer input

    state_new = jnp.concatenate(h_parts + c_parts, axis=1)   # [B, STATE]
    carry_ref[...] = state_new
    state_out_ref[...] = state_new

    # head: one bf16 [B,128] x [128,128] matmul on the packed new state
    # (c rows zeroed in whead), mu in lane 0, presigma in lane 1.
    head = (jnp.dot(state_new.astype(jnp.bfloat16), whead_ref[...],
                    preferred_element_type=jnp.float32)
            + bhead_ref[...])                                # [B, HEAD]
    lane = jax.lax.broadcasted_iota(jnp.int32, head.shape, 1)
    head_ref[0] = jnp.where(lane == 1, jax.nn.softplus(head), head)


# ---------------------------- wrappers ----------------------------

def _pack_state(hidden, cell):
    h_flat = jnp.transpose(hidden, (1, 0, 2)).reshape(BATCH, LAYERS * HIDDEN)
    c_flat = jnp.transpose(cell, (1, 0, 2)).reshape(BATCH, LAYERS * HIDDEN)
    return jnp.concatenate([h_flat, c_flat], axis=1)         # [B, STATE]


def _unpack_state(state):
    h = state[:, :LAYERS * HIDDEN].reshape(BATCH, LAYERS, HIDDEN)
    c = state[:, LAYERS * HIDDEN:].reshape(BATCH, LAYERS, HIDDEN)
    return jnp.transpose(h, (1, 0, 2)), jnp.transpose(c, (1, 0, 2))


def _pad_x(x):
    # [T, B, X_FEAT] -> [T, B, XPAD] pre-padded covariate slab
    return jnp.pad(x.astype(jnp.float32),
                   ((0, 0), (0, 0), (0, XPAD - X_FEAT)))


def _deepar_core(x_pad, idx_b, state_packed, p):
    """x_pad: [T,B,XPAD], idx_b: [B] int32, state_packed: [B,STATE]."""
    T = x_pad.shape[0]
    gb0 = p["gate_bias_tbl"][idx_b]                          # [B, GATES]
    state_out, head_seq = pl.pallas_call(
        deepar_kernel,
        out_shape=(jax.ShapeDtypeStruct((BATCH, STATE), jnp.float32),
                   jax.ShapeDtypeStruct((T, BATCH, HEAD), jnp.float32)),
        grid=(T,),
        in_specs=[
            pl.BlockSpec((1, BATCH, XPAD), lambda t: (t, 0, 0)),   # x[t]
            pl.BlockSpec((BATCH, STATE), lambda t: (0, 0)),        # state0
            pl.BlockSpec((BATCH, GATES), lambda t: (0, 0)),        # gb0
            pl.BlockSpec((LAYERS, 1, GATES), lambda t: (0, 0, 0)),  # bias
            pl.BlockSpec((LAYERS, CAT_K, GATES), lambda t: (0, 0, 0)),  # w_cat
            pl.BlockSpec((STATE, HEAD), lambda t: (0, 0)),         # w_head
            pl.BlockSpec((1, HEAD), lambda t: (0, 0)),             # b_head
        ],
        out_specs=(
            pl.BlockSpec((BATCH, STATE), lambda t: (0, 0)),        # final state
            pl.BlockSpec((1, BATCH, HEAD), lambda t: (t, 0, 0)),   # per-step head
        ),
        scratch_shapes=[pltpu.VMEM((BATCH, STATE), jnp.float32)],  # state carry
        input_output_aliases={1: 0},       # packed state updated in place
        compiler_params=pltpu.CompilerParams(
            dimension_semantics=("arbitrary",)),
    )(x_pad, state_packed, gb0, p["bias"], p["w_cat"], p["w_head"], p["b_head"])
    return head_seq, state_out


@jax.jit
def deepar_forward(x, idx, hidden, cell, p):
    """PyTorch-interface single step.
    x: [1,B,1+cov_dim] f32, idx: [1,B] int, hidden/cell: [L,B,H] f32."""
    head_seq, state_out = _deepar_core(
        _pad_x(x), idx[0].astype(jnp.int32), _pack_state(hidden, cell), p)
    h_new, c_new = _unpack_state(state_out)
    # torch.squeeze(mu) / torch.squeeze(sigma) -> [B]
    return head_seq[0, :, 0], head_seq[0, :, 1], h_new, c_new


@jax.jit
def deepar_rollout(x_seq, idx, hidden, cell, p):
    """T forward steps in ONE pallas_call (== calling forward() T times).
    x_seq: [T,B,1+cov_dim]. Returns mu/sigma per step and the final state."""
    head_seq, state_out = _deepar_core(
        _pad_x(x_seq), idx[0].astype(jnp.int32), _pack_state(hidden, cell), p)
    h_new, c_new = _unpack_state(state_out)
    return head_seq[:, :, 0], head_seq[:, :, 1], h_new, c_new


# ---------------------------- parameters ----------------------------

def init_params(key):
    """Deterministic init matching the PyTorch shapes / init scheme."""
    keys = jax.random.split(key, 16)
    k_lstm = 1.0 / np.sqrt(HIDDEN)
    raw = {}
    raw["embedding"] = jax.random.normal(keys[0], (NUM_CLASS, EMB_DIM),
                                         jnp.float32)
    w_ih, w_hh, b_ih, b_hh = [], [], [], []
    for l in range(LAYERS):
        in_l = IN_DIM if l == 0 else HIDDEN
        kk = jax.random.split(keys[1 + l], 4)
        wi = jax.random.uniform(kk[0], (4 * HIDDEN, in_l), jnp.float32,
                                -k_lstm, k_lstm)
        wh = jax.random.uniform(kk[1], (4 * HIDDEN, HIDDEN), jnp.float32,
                                -k_lstm, k_lstm)
        bi = jax.random.uniform(kk[2], (4 * HIDDEN,), jnp.float32,
                                -k_lstm, k_lstm)
        bh = jax.random.uniform(kk[3], (4 * HIDDEN,), jnp.float32,
                                -k_lstm, k_lstm)
        # bias.data[n//4 : n//2].fill_(1.0)  (forget-gate bias = 1, both biases)
        bi = bi.at[HIDDEN:2 * HIDDEN].set(1.0)
        bh = bh.at[HIDDEN:2 * HIDDEN].set(1.0)
        w_ih.append(wi); w_hh.append(wh); b_ih.append(bi); b_hh.append(bh)
    raw["w_ih"], raw["w_hh"], raw["b_ih"], raw["b_hh"] = w_ih, w_hh, b_ih, b_hh

    k_lin = 1.0 / np.sqrt(HIDDEN * LAYERS)
    raw["W_mu"] = jax.random.uniform(keys[5], (1, HIDDEN * LAYERS),
                                     jnp.float32, -k_lin, k_lin)
    raw["b_mu"] = jax.random.uniform(keys[6], (1,), jnp.float32, -k_lin, k_lin)
    raw["W_ps"] = jax.random.uniform(keys[7], (1, HIDDEN * LAYERS),
                                     jnp.float32, -k_lin, k_lin)
    raw["b_ps"] = jax.random.uniform(keys[8], (1,), jnp.float32, -k_lin, k_lin)

    # ---------------- kernel-friendly packing ----------------
    hp = jax.lax.Precision.HIGHEST
    H = HIDDEN

    def perm_gates(a):      # gate columns (i, f, g, o) -> (i, f, o, g)
        return jnp.concatenate(
            [a[..., :2 * H], a[..., 3 * H:], a[..., 2 * H:3 * H]], axis=-1)

    # fused gate weights over K = [h0 | h1 | c0 | c1 | input-slab]
    blocks = []
    for l in range(LAYERS):
        wb = jnp.zeros((CAT_K, 4 * H), jnp.float32)
        wb = wb.at[l * H:(l + 1) * H, :].set(w_hh[l].T)         # own h rows
        if l == 0:
            wb = wb.at[STATE:STATE + X_FEAT, :].set(w_ih[0].T[:X_FEAT])
        else:
            wb = wb.at[STATE:STATE + HIDDEN, :].set(w_ih[l].T)
        blocks.append(wb)
    w_cat = perm_gates(jnp.stack(blocks)).astype(jnp.bfloat16)  # [L,CAT_K,4H]

    bias = perm_gates(jnp.stack([(b_ih[l] + b_hh[l])[None, :]
                                 for l in range(LAYERS)]))      # [L, 1, 4H]
    # per-series layer-0 gate bias table: E @ W_ih0[:, emb].T + b_ih0 + b_hh0
    w_emb_gates = perm_gates(w_ih[0].T[X_FEAT:])                # [EMB, 4H]
    gate_bias_tbl = (jnp.dot(raw["embedding"], w_emb_gates, precision=hp)
                     + bias[0])                                 # [NUM_CLASS,4H]

    # head: our packed-state h index is l*H + h; PyTorch hidden_permute flat
    # index is h*L + l  ->  reorder rows once here; c rows stay zero.
    wmu_r = raw["W_mu"][0].reshape(HIDDEN, LAYERS).T.reshape(-1)
    wps_r = raw["W_ps"][0].reshape(HIDDEN, LAYERS).T.reshape(-1)
    w_head = jnp.zeros((STATE, HEAD), jnp.float32)
    w_head = w_head.at[:LAYERS * HIDDEN, 0].set(wmu_r)
    w_head = w_head.at[:LAYERS * HIDDEN, 1].set(wps_r)
    w_head = w_head.astype(jnp.bfloat16)
    b_head = jnp.zeros((1, HEAD), jnp.float32)
    b_head = b_head.at[0, 0].set(raw["b_mu"][0]).at[0, 1].set(raw["b_ps"][0])

    packed = {"w_cat": w_cat, "bias": bias, "gate_bias_tbl": gate_bias_tbl,
              "w_head": w_head, "b_head": b_head}
    return raw, packed


# ---------------------------- reference ----------------------------

def ref_forward(x, idx, hidden, cell, raw):
    """Pure-JAX reference mirroring the PyTorch forward exactly."""
    emb = raw["embedding"][idx]                                 # [1, B, E]
    inp = jnp.concatenate([x, emb], axis=2)[0]                  # [B, IN_DIM]
    hp = jax.lax.Precision.HIGHEST
    h_out, c_out = [], []
    for l in range(LAYERS):
        gates = (jnp.dot(inp, raw["w_ih"][l].T, precision=hp) + raw["b_ih"][l]
                 + jnp.dot(hidden[l], raw["w_hh"][l].T, precision=hp)
                 + raw["b_hh"][l])
        i_g = jax.nn.sigmoid(gates[:, 0:HIDDEN])
        f_g = jax.nn.sigmoid(gates[:, HIDDEN:2 * HIDDEN])
        g_g = jnp.tanh(gates[:, 2 * HIDDEN:3 * HIDDEN])
        o_g = jax.nn.sigmoid(gates[:, 3 * HIDDEN:4 * HIDDEN])
        c_new = f_g * cell[l] + i_g * g_g
        h_new = o_g * jnp.tanh(c_new)
        h_out.append(h_new); c_out.append(c_new)
        inp = h_new
    h_stack = jnp.stack(h_out)                                  # [L, B, H]
    c_stack = jnp.stack(c_out)
    hperm = jnp.transpose(h_stack, (1, 2, 0)).reshape(BATCH, -1)  # [B, H*L]
    mu = jnp.dot(hperm, raw["W_mu"].T, precision=hp)[:, 0] + raw["b_mu"][0]
    pre = jnp.dot(hperm, raw["W_ps"].T, precision=hp)[:, 0] + raw["b_ps"][0]
    sigma = jax.nn.softplus(pre)
    return mu, sigma, h_stack, c_stack


if __name__ == "__main__":
    key = jax.random.PRNGKey(0)
    k_par, k_x, k_idx, k_h, k_c, k_seq = jax.random.split(key, 6)
    raw, packed = init_params(k_par)

    x = jax.random.normal(k_x, (1, BATCH, 1 + COV_DIM), jnp.float32)
    idx = jax.random.randint(k_idx, (1, BATCH), 0, NUM_CLASS, jnp.int32)
    hidden = 0.1 * jax.random.normal(k_h, (LAYERS, BATCH, HIDDEN), jnp.float32)
    cell = 0.1 * jax.random.normal(k_c, (LAYERS, BATCH, HIDDEN), jnp.float32)

    # ---- single step (PyTorch DeepAR.forward semantics) ----
    mu, sigma, h_new, c_new = deepar_forward(x, idx, hidden, cell, packed)
    jax.block_until_ready((mu, sigma, h_new, c_new))

    mu_r, sigma_r, h_r, c_r = ref_forward(x, idx, hidden, cell, raw)
    np.testing.assert_allclose(np.asarray(mu), np.asarray(mu_r),
                               rtol=2e-2, atol=1e-2)
    np.testing.assert_allclose(np.asarray(sigma), np.asarray(sigma_r),
                               rtol=2e-2, atol=1e-2)
    np.testing.assert_allclose(np.asarray(h_new), np.asarray(h_r),
                               rtol=2e-2, atol=1e-2)
    np.testing.assert_allclose(np.asarray(c_new), np.asarray(c_r),
                               rtol=2e-2, atol=1e-2)

    # ---- T-step rollout in a single pallas_call ----
    T = 8
    x_seq = jax.random.normal(k_seq, (T, BATCH, 1 + COV_DIM), jnp.float32)
    mu_s, sigma_s, h_s, c_s = deepar_rollout(x_seq, idx, hidden, cell, packed)
    jax.block_until_ready((mu_s, sigma_s, h_s, c_s))

    mu_ref, sig_ref = [], []
    h_ref, c_ref = hidden, cell
    for t in range(T):
        m_t, s_t, h_ref, c_ref = ref_forward(x_seq[t:t + 1], idx, h_ref, c_ref,
                                             raw)
        mu_ref.append(m_t); sig_ref.append(s_t)
    mu_ref = jnp.stack(mu_ref); sig_ref = jnp.stack(sig_ref)
    np.testing.assert_allclose(np.asarray(mu_s), np.asarray(mu_ref),
                               rtol=5e-2, atol=2e-2)
    np.testing.assert_allclose(np.asarray(sigma_s), np.asarray(sig_ref),
                               rtol=5e-2, atol=2e-2)
    np.testing.assert_allclose(np.asarray(h_s), np.asarray(h_ref),
                               rtol=5e-2, atol=2e-2)
    np.testing.assert_allclose(np.asarray(c_s), np.asarray(c_ref),
                               rtol=5e-2, atol=2e-2)

    print("KERNEL_OK")
</pallas_src>

<mosaic_0001>
module attributes {stable_mosaic.version = 11 : i64} {
  func.func @deepar_kernel(%arg0: i32, %arg1: memref<1x8x32xf32, #tpu.memory_space<vmem>>, %arg2: memref<8x128xf32, #tpu.memory_space<vmem>>, %arg3: memref<8x128xf32, #tpu.memory_space<vmem>>, %arg4: memref<2x1x128xf32, #tpu.memory_space<vmem>>, %arg5: memref<2x160x128xbf16, #tpu.memory_space<vmem>>, %arg6: memref<128x128xbf16, #tpu.memory_space<vmem>>, %arg7: memref<1x128xf32, #tpu.memory_space<vmem>>, %arg8: memref<8x128xf32, #tpu.memory_space<vmem>>, %arg9: memref<1x8x128xf32, #tpu.memory_space<vmem>>, %arg10: memref<8x128xf32, #tpu.memory_space<vmem>>) attributes {dimension_semantics = [#tpu.dimension_semantics<arbitrary>], iteration_bounds = array<i64: 1>, scalar_prefetch = 0 : i64, scratch_operands = 1 : i64, tpu.core_type = #tpu.core_type<tc>, window_params = [{transform_indices = @transform_0, window_bounds = array<i64: 1, 8, 32>}, {pipeline_mode = #tpu.pipeline_mode<synchronous>, transform_indices = @transform_1, window_bounds = array<i64: 8, 128>}, {pipeline_mode = #tpu.pipeline_mode<synchronous>, transform_indices = @transform_2, window_bounds = array<i64: 8, 128>}, {pipeline_mode = #tpu.pipeline_mode<synchronous>, transform_indices = @transform_3, window_bounds = array<i64: 2, 1, 128>}, {pipeline_mode = #tpu.pipeline_mode<synchronous>, transform_indices = @transform_4, window_bounds = array<i64: 2, 160, 128>}, {pipeline_mode = #tpu.pipeline_mode<synchronous>, transform_indices = @transform_5, window_bounds = array<i64: 128, 128>}, {pipeline_mode = #tpu.pipeline_mode<synchronous>, transform_indices = @transform_6, window_bounds = array<i64: 1, 128>}, {pipeline_mode = #tpu.pipeline_mode<synchronous>, transform_indices = @transform_7, window_bounds = array<i64: 8, 128>}, {transform_indices = @transform_8, window_bounds = array<i64: 1, 8, 128>}]} {
    %c0_i32 = arith.constant 0 : i32
    %0 = arith.cmpi eq, %arg0, %c0_i32 : i32
    %1 = arith.extui %0 : i1 to i32
    %c0_i32_0 = arith.constant 0 : i32
    %2 = arith.cmpi ne, %1, %c0_i32_0 : i32
    scf.if %2 {
      %c0_32 = arith.constant 0 : index
      %c0_33 = arith.constant 0 : index
      %86 = vector.load %arg2[%c0_32, %c0_33] : memref<8x128xf32, #tpu.memory_space<vmem>>, vector<8x128xf32>
      %c0_34 = arith.constant 0 : index
      %c0_35 = arith.constant 0 : index
      %87 = vector.load %arg10[%c0_34, %c0_35] : memref<8x128xf32, #tpu.memory_space<vmem>>, vector<8x128xf32>
      tpu.vector_store %arg10[%c0_34, %c0_35], %86 {strides = array<i32>} : memref<8x128xf32, #tpu.memory_space<vmem>>, vector<8x128xf32>,
    } else {
    }
    %c0 = arith.constant 0 : index
    %c0_1 = arith.constant 0 : index
    %3 = vector.load %arg10[%c0, %c0_1] : memref<8x128xf32, #tpu.memory_space<vmem>>, vector<8x128xf32>
    %c0_2 = arith.constant 0 : index
    %c0_3 = arith.constant 0 : index
    %c0_4 = arith.constant 0 : index
    %4 = vector.load %arg1[%c0_2, %c0_3, %c0_4] : memref<1x8x32xf32, #tpu.memory_space<vmem>>, vector<1x8x32xf32>
    %5 = vector.shape_cast %4 : vector<1x8x32xf32> to vector<8x32xf32>
    %6 = tpu.concatenate %3, %5 in 1 : vector<8x128xf32>, vector<8x32xf32> -> vector<8x160xf32>
    %7 = arith.truncf %6 : vector<8x160xf32> to vector<8x160xbf16>
    %c0_5 = arith.constant 0 : index
    %c0_6 = arith.constant 0 : index
    %c0_7 = arith.constant 0 : index
    %8 = vector.load %arg5[%c0_5, %c0_6, %c0_7] : memref<2x160x128xbf16, #tpu.memory_space<vmem>>, vector<1x160x128xbf16>
    %9 = vector.shape_cast %8 : vector<1x160x128xbf16> to vector<160x128xbf16>
    %cst = arith.constant dense<0.000000e+00> : vector<8x128xf32>
    %10 = tpu.matmul %7, %9, %cst {dimension_numbers = #tpu.dot_dimension_numbers<[1], [0], [0], [1], [0, 0, 1, 1], [], []>} : vector<8x160xbf16>, vector<160x128xbf16>, vector<8x128xf32> -> vector<8x128xf32>
    %c0_8 = arith.constant 0 : index
    %c0_9 = arith.constant 0 : index
    %11 = vector.load %arg3[%c0_8, %c0_9] : memref<8x128xf32, #tpu.memory_space<vmem>>, vector<8x128xf32>
    %12 = arith.addf %10, %11 : vector<8x128xf32>
    %13 = vector.extract_strided_slice %12 {offsets = [0, 0], sizes = [8, 96], strides = [1, 1]} : vector<8x128xf32> to vector<8x96xf32>
    %14 = arith.negf %13 : vector<8x96xf32>
    %15 = math.exp %14 : vector<8x96xf32>
    %cst_10 = arith.constant 1.000000e+00 : f32
    %16 = vector.broadcast %cst_10 : f32 to vector<8x96xf32>
    %17 = arith.addf %16, %15 : vector<8x96xf32>
    %18 = arith.divf %16, %17 : vector<8x96xf32>
    %19 = vector.extract_strided_slice %12 {offsets = [0, 96], sizes = [8, 32], strides = [1, 1]} : vector<8x128xf32> to vector<8x32xf32>
    %20 = math.tanh %19 : vector<8x32xf32>
    %21 = vector.extract_strided_slice %18 {offsets = [0, 0], sizes = [8, 32], strides = [1, 1]} : vector<8x96xf32> to vector<8x32xf32>
    %22 = vector.extract_strided_slice %18 {offsets = [0, 32], sizes = [8, 32], strides = [1, 1]} : vector<8x96xf32> to vector<8x32xf32>
    %23 = vector.extract_strided_slice %18 {offsets = [0, 64], sizes = [8, 32], strides = [1, 1]} : vector<8x96xf32> to vector<8x32xf32>
    %24 = vector.extract_strided_slice %3 {offsets = [0, 64], sizes = [8, 32], strides = [1, 1]} : vector<8x128xf32> to vector<8x32xf32>
    %25 = arith.mulf %22, %24 : vector<8x32xf32>
    %26 = arith.mulf %21, %20 : vector<8x32xf32>
    %27 = arith.addf %25, %26 : vector<8x32xf32>
    %28 = math.tanh %27 : vector<8x32xf32>
    %29 = arith.mulf %23, %28 : vector<8x32xf32>
    %30 = tpu.concatenate %3, %29 in 1 : vector<8x128xf32>, vector<8x32xf32> -> vector<8x160xf32>
    %31 = arith.truncf %30 : vector<8x160xf32> to vector<8x160xbf16>
    %c1 = arith.constant 1 : index
    %c0_11 = arith.constant 0 : index
    %c0_12 = arith.constant 0 : index
    %32 = vector.load %arg5[%c1, %c0_11, %c0_12] : memref<2x160x128xbf16, #tpu.memory_space<vmem>>, vector<1x160x128xbf16>
    %33 = vector.shape_cast %32 : vector<1x160x128xbf16> to vector<160x128xbf16>
    %cst_13 = arith.constant dense<0.000000e+00> : vector<8x128xf32>
    %34 = tpu.matmul %31, %33, %cst_13 {dimension_numbers = #tpu.dot_dimension_numbers<[1], [0], [0], [1], [0, 0, 1, 1], [], []>} : vector<8x160xbf16>, vector<160x128xbf16>, vector<8x128xf32> -> vector<8x128xf32>
    %c1_14 = arith.constant 1 : index
    %c0_15 = arith.constant 0 : index
    %c0_16 = arith.constant 0 : index
    %35 = vector.load %arg4[%c1_14, %c0_15, %c0_16] : memref<2x1x128xf32, #tpu.memory_space<vmem>>, vector<1x1x128xf32>
    %36 = vector.shape_cast %35 : vector<1x1x128xf32> to vector<1x128xf32>
    %37 = vector.broadcast %36 : vector<1x128xf32> to vector<8x128xf32>
    %38 = arith.addf %34, %37 : vector<8x128xf32>
    %39 = vector.extract_strided_slice %38 {offsets = [0, 0], sizes = [8, 96], strides = [1, 1]} : vector<8x128xf32> to vector<8x96xf32>
    %40 = arith.negf %39 : vector<8x96xf32>
    %41 = math.exp %40 : vector<8x96xf32>
    %cst_17 = arith.constant 1.000000e+00 : f32
    %42 = vector.broadcast %cst_17 : f32 to vector<8x96xf32>
    %43 = arith.addf %42, %41 : vector<8x96xf32>
    %44 = arith.divf %42, %43 : vector<8x96xf32>
    %45 = vector.extract_strided_slice %38 {offsets = [0, 96], sizes = [8, 32], strides = [1, 1]} : vector<8x128xf32> to vector<8x32xf32>
    %46 = math.tanh %45 : vector<8x32xf32>
    %47 = vector.extract_strided_slice %44 {offsets = [0, 0], sizes = [8, 32], strides = [1, 1]} : vector<8x96xf32> to vector<8x32xf32>
    %48 = vector.extract_strided_slice %44 {offsets = [0, 32], sizes = [8, 32], strides = [1, 1]} : vector<8x96xf32> to vector<8x32xf32>
    %49 = vector.extract_strided_slice %44 {offsets = [0, 64], sizes = [8, 32], strides = [1, 1]} : vector<8x96xf32> to vector<8x32xf32>
    %50 = vector.extract_strided_slice %3 {offsets = [0, 96], sizes = [8, 32], strides = [1, 1]} : vector<8x128xf32> to vector<8x32xf32>
    %51 = arith.mulf %48, %50 : vector<8x32xf32>
    %52 = arith.mulf %47, %46 : vector<8x32xf32>
    %53 = arith.addf %51, %52 : vector<8x32xf32>
    %54 = math.tanh %53 : vector<8x32xf32>
    %55 = arith.mulf %49, %54 : vector<8x32xf32>
    %56 = tpu.concatenate %29, %55, %27, %53 in 1 : vector<8x32xf32>, vector<8x32xf32>, vector<8x32xf32>, vector<8x32xf32> -> vector<8x128xf32>
    %c0_18 = arith.constant 0 : index
    %c0_19 = arith.constant 0 : index
    %57 = vector.load %arg10[%c0_18, %c0_19] : memref<8x128xf32, #tpu.memory_space<vmem>>, vector<8x128xf32>
    tpu.vector_store %arg10[%c0_18, %c0_19], %56 {strides = array<i32>} : memref<8x128xf32, #tpu.memory_space<vmem>>, vector<8x128xf32>,
    %c0_20 = arith.constant 0 : index
    %c0_21 = arith.constant 0 : index
    %58 = vector.load %arg8[%c0_20, %c0_21] : memref<8x128xf32, #tpu.memory_space<vmem>>, vector<8x128xf32>
    tpu.vector_store %arg8[%c0_20, %c0_21], %56 {strides = array<i32>} : memref<8x128xf32, #tpu.memory_space<vmem>>, vector<8x128xf32>,
    %59 = arith.truncf %56 : vector<8x128xf32> to vector<8x128xbf16>
    %c0_22 = arith.constant 0 : index
    %c0_23 = arith.constant 0 : index
    %60 = vector.load %arg6[%c0_22, %c0_23] : memref<128x128xbf16, #tpu.memory_space<vmem>>, vector<128x128xbf16>
    %cst_24 = arith.constant dense<0.000000e+00> : vector<8x128xf32>
    %61 = tpu.matmul %59, %60, %cst_24 {dimension_numbers = #tpu.dot_dimension_numbers<[1], [0], [0], [1], [0, 0, 1, 1], [], []>} : vector<8x128xbf16>, vector<128x128xbf16>, vector<8x128xf32> -> vector<8x128xf32>
    %c0_25 = arith.constant 0 : index
    %c0_26 = arith.constant 0 : index
    %62 = vector.load %arg7[%c0_25, %c0_26] : memref<1x128xf32, #tpu.memory_space<vmem>>, vector<1x128xf32>
    %63 = vector.broadcast %62 : vector<1x128xf32> to vector<8x128xf32>
    %64 = arith.addf %61, %63 : vector<8x128xf32>
    %65 = tpu.iota {dimensions = array<i32: 1>} : vector<8x128xi32>
    %c1_i32 = arith.constant 1 : i32
    %66 = vector.broadcast %c1_i32 : i32 to vector<8x128xi32>
    %67 = arith.cmpi eq, %65, %66 : vector<8x128xi32>
    %cst_27 = arith.constant 0.000000e+00 : f32
    %68 = vector.broadcast %cst_27 : f32 to vector<8x128xf32>
    %69 = arith.maximumf %64, %68 : vector<8x128xf32>
    %70 = vector.broadcast %cst_27 : f32 to vector<8x128xf32>
    %71 = arith.subf %64, %70 : vector<8x128xf32>
    %72 = arith.cmpf one, %71, %71 : vector<8x128xf32>
    %73 = vector.broadcast %cst_27 : f32 to vector<8x128xf32>
    %74 = arith.addf %64, %73 : vector<8x128xf32>
    %75 = math.absf %71 : vector<8x128xf32>
    %cst_28 = arith.constant 0.000000e+00 : f32
    %76 = vector.broadcast %cst_28 : f32 to vector<8x128xf32>
    %77 = arith.subf %76, %75 : vector<8x128xf32>
    %78 = math.exp %77 : vector<8x128xf32>
    %79 = math.log1p %78 : vector<8x128xf32>
    %80 = arith.addf %69, %79 : vector<8x128xf32>
    %81 = arith.select %72, %74, %80 : vector<8x128xi1>, vector<8x128xf32>
    %82 = arith.select %67, %81, %64 : vector<8x128xi1>, vector<8x128xf32>
    %c0_29 = arith.constant 0 : index
    %c0_30 = arith.constant 0 : index
    %c0_31 = arith.constant 0 : index
    %83 = vector.load %arg9[%c0_29, %c0_30, %c0_31] : memref<1x8x128xf32, #tpu.memory_space<vmem>>, vector<1x8x128xf32>
    %84 = vector.shape_cast %83 : vector<1x8x128xf32> to vector<8x128xf32>
    %85 = vector.shape_cast %82 : vector<8x128xf32> to vector<1x8x128xf32>
    tpu.vector_store %arg9[%c0_29, %c0_30, %c0_31], %85 {strides = array<i32>} : memref<1x8x128xf32, #tpu.memory_space<vmem>>, vector<1x8x128xf32>,
    return
  }
  func.func @transform_0(%arg0: i32) -> (i32, i32, i32) {
    %c0_i32 = arith.constant 0 : i32
    %c0_i32_0 = arith.constant 0 : i32
    %c0_i32_1 = arith.constant 0 : i32
    return %arg0, %c0_i32, %c0_i32_0 : i32, i32, i32
  }
  func.func @transform_1(%arg0: i32) -> (i32, i32) {
    %c0_i32 = arith.constant 0 : i32
    %c0_i32_0 = arith.constant 0 : i32
    %c0_i32_1 = arith.constant 0 : i32
    return %c0_i32, %c0_i32_0 : i32, i32
  }
  func.func @transform_2(%arg0: i32) -> (i32, i32) {
    %c0_i32 = arith.constant 0 : i32
    %c0_i32_0 = arith.constant 0 : i32
    %c0_i32_1 = arith.constant 0 : i32
    return %c0_i32, %c0_i32_0 : i32, i32
  }
  func.func @transform_3(%arg0: i32) -> (i32, i32, i32) {
    %c0_i32 = arith.constant 0 : i32
    %c0_i32_0 = arith.constant 0 : i32
    %c0_i32_1 = arith.constant 0 : i32
    %c0_i32_2 = arith.constant 0 : i32
    return %c0_i32, %c0_i32_0, %c0_i32_1 : i32, i32, i32
  }
  func.func @transform_4(%arg0: i32) -> (i32, i32, i32) {
    %c0_i32 = arith.constant 0 : i32
    %c0_i32_0 = arith.constant 0 : i32
    %c0_i32_1 = arith.constant 0 : i32
    %c0_i32_2 = arith.constant 0 : i32
    return %c0_i32, %c0_i32_0, %c0_i32_1 : i32, i32, i32
  }
  func.func @transform_5(%arg0: i32) -> (i32, i32) {
    %c0_i32 = arith.constant 0 : i32
    %c0_i32_0 = arith.constant 0 : i32
    %c0_i32_1 = arith.constant 0 : i32
    return %c0_i32, %c0_i32_0 : i32, i32
  }
  func.func @transform_6(%arg0: i32) -> (i32, i32) {
    %c0_i32 = arith.constant 0 : i32
    %c0_i32_0 = arith.constant 0 : i32
    %c0_i32_1 = arith.constant 0 : i32
    return %c0_i32, %c0_i32_0 : i32, i32
  }
  func.func @transform_7(%arg0: i32) -> (i32, i32) {
    %c0_i32 = arith.constant 0 : i32
    %c0_i32_0 = arith.constant 0 : i32
    %c0_i32_1 = arith.constant 0 : i32
    return %c0_i32, %c0_i32_0 : i32, i32
  }
  func.func @transform_8(%arg0: i32) -> (i32, i32, i32) {
    %c0_i32 = arith.constant 0 : i32
    %c0_i32_0 = arith.constant 0 : i32
    %c0_i32_1 = arith.constant 0 : i32
    return %arg0, %c0_i32, %c0_i32_0 : i32, i32, i32
  }
}

</mosaic_0001>

<llo_original>
// kernel: deepar_forward.1
$region0: #{deepar_forward.1}
  #allocation0 [shape = 'u32[]', space=smem, size = 0x4, offset = 0x4, fixed_abs, tag = 'smem constant byte address 0x4 - core index']
  #allocation1 [shape = 'u32[72,128]{1,0:T(1,128)}', space=vmem, size = 0x9000, scoped, tag = 'internal scratch']
  #allocation2 [shape = 'f32[8,128]{1,0:T(8,128)}', space=vmem, size = 0x1000, scoped, tag = 'scratch operand']
  %s0 = inlined_call_operand.vmem [shape: f32[1,8,32], index: 0, kind: input, shape index: {}]
  %s1 = inlined_call_operand.vmem [shape: f32[8,128], index: 1, kind: input, shape index: {}, may-alias: {1,7}]
  %s2 = inlined_call_operand.vmem [shape: f32[8,128], index: 2, kind: input, shape index: {}]
  %s3 = inlined_call_operand.vmem [shape: f32[2,1,128], index: 3, kind: input, shape index: {}]
  %s4 = inlined_call_operand.hbm [shape: bf16[2,160,128], index: 4, kind: input, shape index: {}]
  %s5 = inlined_call_operand.vmem [shape: bf16[128,128], index: 5, kind: input, shape index: {}]
  %s6 = inlined_call_operand.vmem [shape: f32[1,128], index: 6, kind: input, shape index: {}]
  %s7 = inlined_call_operand.vmem [shape: f32[8,128], index: 7, kind: output, shape index: {0}, may-alias: {1,7}]
  %s8 = inlined_call_operand.vmem [shape: f32[1,8,128], index: 8, kind: output, shape index: {1}]
  %9 = xla_tuple %s7, %s8
  %s10 = sld [smem:[#allocation0]]
  $region54: #{deepar_forward.1} parent=0
    _
  %s12 = ssub.s32 1, %s10
  %s13 = scalar_select 0, %s12, %s10
  $region1: #{deepar_forward.1} parent=0
    #allocation3 [shape = 'u8[81920]{0}', space=vmem, size = 0x14000, scoped, tag = 'input window, operand 4, single buffered']
    #allocation4 [shape = 's32[1]{0}', space=sflag, size = 0x4, scoped, tag = 'scoped memory for deepar_forward.1']
    %14 = vsyncpa [#allocation4], 0
    // Predicated region
    $region2: #{deepar_forward.1} parent=1 // pred_check
      _
    $region3: #{deepar_forward.1} parent=1 // pred_check_branch
      %16 = sbr.rel (0) target = $region5
    $region4: #{deepar_forward.1} parent=1 // pred_region
      _
    $region5: #{deepar_forward.1} parent=1 // pred_fallthru
      _
    // Predicated region
    $region6: #{deepar_forward.1} parent=1 // pred_check
      _
    $region7: #{deepar_forward.1} parent=1 // pred_check_branch
      %18 = sbr.rel (0) target = $region9
    $region8: #{deepar_forward.1} parent=1 // pred_region
      _
    $region9: #{deepar_forward.1} parent=1 // pred_fallthru
      _
    // Predicated region
    $region10: #{deepar_forward.1} parent=1 // pred_check
      _
    $region11: #{deepar_forward.1} parent=1 // pred_check_branch
      %20 = sbr.rel (0) target = $region13
    $region12: #{deepar_forward.1} parent=1 // pred_region
      _
    $region13: #{deepar_forward.1} parent=1 // pred_fallthru
      _
    // Predicated region
    $region14: #{deepar_forward.1} parent=1 // pred_check
      _
    $region15: #{deepar_forward.1} parent=1 // pred_check_branch
      %22 = sbr.rel (0) target = $region17
    $region16: #{deepar_forward.1} parent=1 // pred_region
      _
    $region17: #{deepar_forward.1} parent=1 // pred_fallthru
      _
    // Predicated region
    $region18: #{deepar_forward.1} parent=1 // pred_check
      _
    $region19: #{deepar_forward.1} parent=1 // pred_check_branch
      %24 = sbr.rel (0) target = $region21
    $region20: #{deepar_forward.1} parent=1 // pred_region
      %26 = vsyncadd [#allocation4], 0
      %s27 = sshll.u32 %s4, 4
      %s28 = int_to_ptr.hbm [resolvable:$true] %s27
      %s29 = sshll.u32 [#allocation3], 4
      %s30 = int_to_ptr.vmem [resolvable:$true] %s29
      %35 = dma.hbm_to_vmem [thread:$0]  %s28, 2560, %s30, [#allocation4], 64, 64, 4
    $region21: #{deepar_forward.1} parent=1 // pred_fallthru
      _
    // Predicated region
    $region22: #{deepar_forward.1} parent=1 // pred_check
      _
    $region23: #{deepar_forward.1} parent=1 // pred_check_branch
      %37 = sbr.rel (0) target = $region25
    $region24: #{deepar_forward.1} parent=1 // pred_region
      _
    $region25: #{deepar_forward.1} parent=1 // pred_fallthru
      _
    // Predicated region
    $region26: #{deepar_forward.1} parent=1 // pred_check
      _
    $region27: #{deepar_forward.1} parent=1 // pred_check_branch
      %39 = sbr.rel (0) target = $region29
    $region28: #{deepar_forward.1} parent=1 // pred_region
      _
    $region29: #{deepar_forward.1} parent=1 // pred_fallthru
      _
    // Predicated region
    $region30: #{deepar_forward.1} parent=1 // pred_check
      _
    $region31: #{deepar_forward.1} parent=1 // pred_check_branch
      %41 = sbr.rel (0) target = $region33
    $region32: #{deepar_forward.1} parent=1 // pred_region
      %43 = dma.done [#allocation4], 2560
    $region33: #{deepar_forward.1} parent=1 // pred_fallthru
      _
    %p45 = scmp.eq.s32.totalorder 0, 0
    // Predicated region
    $region34: #{deepar_forward.1} parent=1 // pred_check
      %p46 = pneg %p45
    $region35: #{deepar_forward.1} parent=1 // pred_check_branch
      %48 = sbr.rel (%p46) target = $region37
    $region36: #{deepar_forward.1} parent=1 // pred_region
      %v49 = vld [vmem:[%s1] sm:$0xff]
      %50 = vst [vmem:[#allocation2] sm:$0xff] %v49
    $region37: #{deepar_forward.1} parent=1 // pred_fallthru
      _
    %v51 = vld [vmem:[#allocation2] sm:$0xff]
    %v52 = vld [vmem:[%s0] sm:$0xff]
    %v53 = vpack.c.bf16 %v51, %v51
    %v54 = vpack.c.bf16 %v52, %v52
    %v55 = vld [vmem:[#allocation3] sm:$0xf]
    %v56 = vld [vmem:[#allocation3 + $0x4] sm:$0xf]
    %v57 = vld [vmem:[#allocation3 + $0x8] sm:$0xf]
    %v58 = vld [vmem:[#allocation3 + $0xc] sm:$0xf]
    %v59 = vld [vmem:[#allocation3 + $0x10] sm:$0xf]
    %v60 = vld [vmem:[#allocation3 + $0x14] sm:$0xf]
    %v61 = vld [vmem:[#allocation3 + $0x18] sm:$0xf]
    %v62 = vld [vmem:[#allocation3 + $0x1c] sm:$0xf]
    %v63 = vld [vmem:[#allocation3 + $0x20] sm:$0xf]
    %v64 = vld [vmem:[#allocation3 + $0x24] sm:$0xf]
    %v65 = vld [vmem:[#allocation3 + $0x28] sm:$0xf]
    %v66 = vld [vmem:[#allocation3 + $0x2c] sm:$0xf]
    %v67 = vld [vmem:[#allocation3 + $0x30] sm:$0xf]
    %v68 = vld [vmem:[#allocation3 + $0x34] sm:$0xf]
    %v69 = vld [vmem:[#allocation3 + $0x38] sm:$0xf]
    %v70 = vld [vmem:[#allocation3 + $0x3c] sm:$0xf]
    %v71 = vld [vmem:[#allocation3 + $0x40] sm:$0xf]
    %v72 = vld [vmem:[#allocation3 + $0x44] sm:$0xf]
    %v73 = vld [vmem:[#allocation3 + $0x48] sm:$0xf]
    %v74 = vld [vmem:[#allocation3 + $0x4c] sm:$0xf]
    %v75 = vld [vmem:[%s2] sm:$0xff]
    %v96 = vunpack.c.l.b16 %v55
    %v97 = vunpack.c.l.b16 %v56
    %v98 = vunpack.c.l.b16 %v57
    %v99 = vunpack.c.l.b16 %v58
    %v100 = vunpack.c.l.b16 %v59
    %v101 = vunpack.c.l.b16 %v60
    %v102 = vunpack.c.l.b16 %v61
    %v103 = vunpack.c.l.b16 %v62
    %v104 = vunpack.c.l.b16 %v63
    %v105 = vunpack.c.l.b16 %v64
    %v106 = vunpack.c.l.b16 %v65
    %v107 = vunpack.c.l.b16 %v66
    %v108 = vunpack.c.l.b16 %v67
    %v109 = vunpack.c.l.b16 %v68
    %v110 = vunpack.c.l.b16 %v69
    %v111 = vunpack.c.l.b16 %v70
    %v112 = vunpack.c.l.b16 %v71
    %v113 = vunpack.c.l.b16 %v72
    %v114 = vunpack.c.l.b16 %v73
    %v115 = vunpack.c.l.b16 %v74
    %v116 = vpack.c.b16 %v97, %v96
    %v117 = vpack.c.b16 %v99, %v98
    %v118 = vpack.c.b16 %v101, %v100
    %v119 = vpack.c.b16 %v103, %v102
    %v120 = vpack.c.b16 %v105, %v104
    %v121 = vpack.c.b16 %v107, %v106
    %v122 = vpack.c.b16 %v109, %v108
    %v123 = vpack.c.b16 %v111, %v110
    %v124 = vpack.c.b16 %v113, %v112
    %v125 = vpack.c.b16 %v115, %v114
    %vm136 = vcmask 261120
    %v138 = vsel %vm136, %v54, 0
    %140 = vmatpush.bf16.msra.mxu0 %v123
    %141 = vmatpush.bf16.msra.mxu0 %v122
    %142 = vmatpush.bf16.msra.mxu0 %v121
    %143 = vmatpush.bf16.msra.mxu0 %v120
    %144 = vmatpush.bf16.msra.mxu0 %v119
    %145 = vmatpush.bf16.msra.mxu0 %v118
    %146 = vmatpush.bf16.msra.mxu0 %v117
    %147 = vmatpush.bf16.msra.mxu0 %v116
    %148 = vmatmul.bf16.gmra.mxu0 %v53
    %v149 = vpop.f32.mrf.mxu0
    %v150 = vadd.f32 %v75, %v149
    %v151 = vpop.f32.mrf.mxu0
    %152 = vdwg.mxu0
    %153 = vmatpush.bf16.msra.mxu0 0
    %154 = vmatpush.bf16.msra.mxu0 0
    %155 = vmatpush.bf16.msra.mxu0 0
    %156 = vmatpush.bf16.msra.mxu0 0
    %157 = vmatpush.bf16.msra.mxu0 0
    %158 = vmatpush.bf16.msra.mxu0 0
    %159 = vmatpush.bf16.msra.mxu0 %v125
    %160 = vmatpush.bf16.msra.mxu0 %v124
    %161 = vmatmul.bf16.gmra.mxu0 %v138
    %v162 = vpop.f32.mrf.mxu0
    %v163 = vadd.f32 %v150, %v162
    %v164 = vpop.f32.mrf.mxu0
    %165 = vdwg.mxu0
    %v166 = vxor.u32 %v163, 2147483648
    %v167 = vmul.f32 %v166, 1.442695
    %v168 = vpow.pop %v167
    %v169 = vadd.f32 %v168, 1.0
    %v170 = vrcp.pop %v169
    %v171 = vmul.f32 %v169, %v170
    %v172 = vsub.f32 1.0, %v171
    %v173 = vmul.f32 %v170, %v172
    %v174 = vadd.f32 %v170, %v173
    %vm175 = vweird.f32 %v169
    %vm176 = vweird.f32 %v170
    %vm177 = vmor %vm175, %vm176
    %v178 = vsel %vm177, %v170, %v174
    %v179 = vand.u32 2147483647, %v169
    %vm180 = vcmp.eq.f32.partialorder %v179, 8.507059e+37
    %v181 = vand.u32 %v169, 2147483648
    %v182 = vor.u32 1.1754944e-38, %v181
    %v183 = vsel %vm180, %v182, %v178
    %v184 = vmul.f32 1.0, %v183
    %v185 = vtanh.pop %v163
    %187 = vrot.lane.b32.xlu0 %v51, 96
    %v188 = vpop.permute.xlu0 %187
    %v190 = vmul.f32 %v184, %v188
    %192 = vrot.lane.b32.xlu0 %v185, 32
    %v193 = vpop.permute.xlu0 %192
    %v195 = vmul.f32 %v184, %v193
    %197 = vrot.lane.b32.xlu0 %v195, 32
    %v198 = vpop.permute.xlu0 %197
    %v200 = vadd.f32 %v190, %v198
    %v201 = vtanh.pop %v200
    %203 = vrot.lane.b32.xlu0 %v201, 32
    %v204 = vpop.permute.xlu0 %203
    %v206 = vmul.f32 %v184, %v204
    %208 = vrot.lane.b32.xlu0 %v206, 64
    %v209 = vpop.permute.xlu0 %208
    %v211 = vpack.c.bf16 %v209, %v209
    %s212 = scalar_lea.vmem [#allocation3], 80
    %v213 = vld [vmem:[%s212] sm:$0xf]
    %v214 = vld [vmem:[%s212 + $0x4] sm:$0xf]
    %v215 = vld [vmem:[%s212 + $0x8] sm:$0xf]
    %v216 = vld [vmem:[%s212 + $0xc] sm:$0xf]
    %v217 = vld [vmem:[%s212 + $0x10] sm:$0xf]
    %v218 = vld [vmem:[%s212 + $0x14] sm:$0xf]
    %v219 = vld [vmem:[%s212 + $0x18] sm:$0xf]
    %v220 = vld [vmem:[%s212 + $0x1c] sm:$0xf]
    %v221 = vld [vmem:[%s212 + $0x20] sm:$0xf]
    %v222 = vld [vmem:[%s212 + $0x24] sm:$0xf]
    %v223 = vld [vmem:[%s212 + $0x28] sm:$0xf]
    %v224 = vld [vmem:[%s212 + $0x2c] sm:$0xf]
    %v225 = vld [vmem:[%s212 + $0x30] sm:$0xf]
    %v226 = vld [vmem:[%s212 + $0x34] sm:$0xf]
    %v227 = vld [vmem:[%s212 + $0x38] sm:$0xf]
    %v228 = vld [vmem:[%s212 + $0x3c] sm:$0xf]
    %v229 = vld [vmem:[%s212 + $0x40] sm:$0xf]
    %v230 = vld [vmem:[%s212 + $0x44] sm:$0xf]
    %v231 = vld [vmem:[%s212 + $0x48] sm:$0xf]
    %v232 = vld [vmem:[%s212 + $0x4c] sm:$0xf]
    %s233 = scalar_lea.vmem %s3, 1
    %v234 = vld [vmem:[%s233] sm:$0x1]
    %v236 = vperm.slane %v234, 0
    %v258 = vunpack.c.l.b16 %v213
    %v259 = vunpack.c.l.b16 %v214
    %v260 = vunpack.c.l.b16 %v215
    %v261 = vunpack.c.l.b16 %v216
    %v262 = vunpack.c.l.b16 %v217
    %v263 = vunpack.c.l.b16 %v218
    %v264 = vunpack.c.l.b16 %v219
    %v265 = vunpack.c.l.b16 %v220
    %v266 = vunpack.c.l.b16 %v221
    %v267 = vunpack.c.l.b16 %v222
    %v268 = vunpack.c.l.b16 %v223
    %v269 = vunpack.c.l.b16 %v224
    %v270 = vunpack.c.l.b16 %v225
    %v271 = vunpack.c.l.b16 %v226
    %v272 = vunpack.c.l.b16 %v227
    %v273 = vunpack.c.l.b16 %v228
    %v274 = vunpack.c.l.b16 %v229
    %v275 = vunpack.c.l.b16 %v230
    %v276 = vunpack.c.l.b16 %v231
    %v277 = vunpack.c.l.b16 %v232
    %v278 = vpack.c.b16 %v259, %v258
    %v279 = vpack.c.b16 %v261, %v260
    %v280 = vpack.c.b16 %v263, %v262
    %v281 = vpack.c.b16 %v265, %v264
    %v282 = vpack.c.b16 %v267, %v266
    %v283 = vpack.c.b16 %v269, %v268
    %v284 = vpack.c.b16 %v271, %v270
    %v285 = vpack.c.b16 %v273, %v272
    %v286 = vpack.c.b16 %v275, %v274
    %v287 = vpack.c.b16 %v277, %v276
    %v299 = vsel %vm136, %v211, 0
    %301 = vmatpush.bf16.msra.mxu0 %v285
    %302 = vmatpush.bf16.msra.mxu0 %v284
    %303 = vmatpush.bf16.msra.mxu0 %v283
    %304 = vmatpush.bf16.msra.mxu0 %v282
    %305 = vmatpush.bf16.msra.mxu0 %v281
    %306 = vmatpush.bf16.msra.mxu0 %v280
    %307 = vmatpush.bf16.msra.mxu0 %v279
    %308 = vmatpush.bf16.msra.mxu0 %v278
    %309 = vmatmul.bf16.gmra.mxu0 %v53
    %v310 = vpop.f32.mrf.mxu0
    %v311 = vadd.f32 %v236, %v310
    %v312 = vpop.f32.mrf.mxu0
    %313 = vdwg.mxu0
    %314 = vmatpush.bf16.msra.mxu0 0
    %315 = vmatpush.bf16.msra.mxu0 0
    %316 = vmatpush.bf16.msra.mxu0 0
    %317 = vmatpush.bf16.msra.mxu0 0
    %318 = vmatpush.bf16.msra.mxu0 0
    %319 = vmatpush.bf16.msra.mxu0 0
    %320 = vmatpush.bf16.msra.mxu0 %v287
    %321 = vmatpush.bf16.msra.mxu0 %v286
    %322 = vmatmul.bf16.gmra.mxu0 %v299
    %v323 = vpop.f32.mrf.mxu0
    %v324 = vadd.f32 %v311, %v323
    %v325 = vpop.f32.mrf.mxu0
    %326 = vdwg.mxu0
    %v327 = vxor.u32 %v324, 2147483648
    %v328 = vmul.f32 %v327, 1.442695
    %v329 = vpow.pop %v328
    %v330 = vadd.f32 %v329, 1.0
    %v331 = vrcp.pop %v330
    %v332 = vmul.f32 %v330, %v331
    %v333 = vsub.f32 1.0, %v332
    %v334 = vmul.f32 %v331, %v333
    %v335 = vadd.f32 %v331, %v334
    %vm336 = vweird.f32 %v330
    %vm337 = vweird.f32 %v331
    %vm338 = vmor %vm336, %vm337
    %v339 = vsel %vm338, %v331, %v335
    %v340 = vand.u32 2147483647, %v330
    %vm341 = vcmp.eq.f32.partialorder %v340, 8.507059e+37
    %v342 = vand.u32 %v330, 2147483648
    %v343 = vor.u32 1.1754944e-38, %v342
    %v344 = vsel %vm341, %v343, %v339
    %v345 = vmul.f32 1.0, %v344
    %v346 = vtanh.pop %v324
    %347 = vrot.lane.b32.xlu0 %v51, 64
    %v348 = vpop.permute.xlu0 %347
    %v350 = vmul.f32 %v345, %v348
    %352 = vrot.lane.b32.xlu0 %v346, 32
    %v353 = vpop.permute.xlu0 %352
    %v355 = vmul.f32 %v345, %v353
    %357 = vrot.lane.b32.xlu0 %v355, 32
    %v358 = vpop.permute.xlu0 %357
    %v360 = vadd.f32 %v350, %v358
    %v361 = vtanh.pop %v360
    %363 = vrot.lane.b32.xlu0 %v361, 32
    %v364 = vpop.permute.xlu0 %363
    %v366 = vmul.f32 %v345, %v364
    %368 = vrot.lane.b32.xlu0 %v366, 96
    %v369 = vpop.permute.xlu0 %368
    %372 = vrot.lane.b32.xlu0 %v200, 32
    %v373 = vpop.permute.xlu0 %372
    %376 = vrot.lane.b32.xlu0 %v360, 64
    %v377 = vpop.permute.xlu0 %376
    %v379 = vsel %vm136, %v209, %v369
    %vm380 = vcmask 523264
    %v381 = vsel %vm380, %v379, %v373
    %vm382 = vcmask 785408
    %v383 = vsel %vm382, %v381, %v377
    %384 = vst [vmem:[#allocation2] sm:$0xff] %v383
    %385 = vst [vmem:[%s7] sm:$0xff] %v383
    %v386 = vpack.c.bf16 %v383, %v383
    %v387 = vld [vmem:[%s5] sm:$0xf]
    %v388 = vld [vmem:[%s5 + $0x4] sm:$0xf]
    %v389 = vld [vmem:[%s5 + $0x8] sm:$0xf]
    %v390 = vld [vmem:[%s5 + $0xc] sm:$0xf]
    %v391 = vld [vmem:[%s5 + $0x10] sm:$0xf]
    %v392 = vld [vmem:[%s5 + $0x14] sm:$0xf]
    %v393 = vld [vmem:[%s5 + $0x18] sm:$0xf]
    %v394 = vld [vmem:[%s5 + $0x1c] sm:$0xf]
    %v395 = vld [vmem:[%s5 + $0x20] sm:$0xf]
    %v396 = vld [vmem:[%s5 + $0x24] sm:$0xf]
    %v397 = vld [vmem:[%s5 + $0x28] sm:$0xf]
    %v398 = vld [vmem:[%s5 + $0x2c] sm:$0xf]
    %v399 = vld [vmem:[%s5 + $0x30] sm:$0xf]
    %v400 = vld [vmem:[%s5 + $0x34] sm:$0xf]
    %v401 = vld [vmem:[%s5 + $0x38] sm:$0xf]
    %v402 = vld [vmem:[%s5 + $0x3c] sm:$0xf]
    %v403 = vld [vmem:[%s6] sm:$0x1]
    %v405 = vperm.slane %v403, 0
    %v423 = vunpack.c.l.b16 %v387
    %v424 = vunpack.c.l.b16 %v388
    %v425 = vunpack.c.l.b16 %v389
    %v426 = vunpack.c.l.b16 %v390
    %v427 = vunpack.c.l.b16 %v391
    %v428 = vunpack.c.l.b16 %v392
    %v429 = vunpack.c.l.b16 %v393
    %v430 = vunpack.c.l.b16 %v394
    %v431 = vunpack.c.l.b16 %v395
    %v432 = vunpack.c.l.b16 %v396
    %v433 = vunpack.c.l.b16 %v397
    %v434 = vunpack.c.l.b16 %v398
    %v435 = vunpack.c.l.b16 %v399
    %v436 = vunpack.c.l.b16 %v400
    %v437 = vunpack.c.l.b16 %v401
    %v438 = vunpack.c.l.b16 %v402
    %v439 = vpack.c.b16 %v424, %v423
    %v440 = vpack.c.b16 %v426, %v425
    %v441 = vpack.c.b16 %v428, %v427
    %v442 = vpack.c.b16 %v430, %v429
    %v443 = vpack.c.b16 %v432, %v431
    %v444 = vpack.c.b16 %v434, %v433
    %v445 = vpack.c.b16 %v436, %v435
    %v446 = vpack.c.b16 %v438, %v437
    %455 = vmatpush.bf16.msra.mxu0 %v446
    %456 = vmatpush.bf16.msra.mxu0 %v445
    %457 = vmatpush.bf16.msra.mxu0 %v444
    %458 = vmatpush.bf16.msra.mxu0 %v443
    %459 = vmatpush.bf16.msra.mxu0 %v442
    %460 = vmatpush.bf16.msra.mxu0 %v441
    %461 = vmatpush.bf16.msra.mxu0 %v440
    %462 = vmatpush.bf16.msra.mxu0 %v439
    %463 = vmatmul.bf16.gmra.mxu0 %v386
    %v464 = vpop.f32.mrf.mxu0
    %v465 = vadd.f32 %v405, %v464
    %v466 = vpop.f32.mrf.mxu0
    %467 = vdwg.mxu0
    %v468 = vlaneseq
    %v469 = vand.u32 %v468, 127
    %vm470 = vcmp.eq.s32.totalorder %v469, 1
    %v471 = vmax.f32 %v465, 0.0
    %vm472 = vcmp.ne.f32.partialorder %v465, %v465
    %v473 = vadd.f32 %v465, 0.0
    %v474 = vand.u32 2147483647, %v465
    %v475 = vsub.f32 0.0, %v474
    %v476 = vmul.f32 %v475, 1.442695
    %v477 = vpow.pop %v476
    %v478 = vadd.f32 %v477, 1.0
    %v479 = vlog2.pop %v478
    %v480 = vmul.f32 %v479, 0.6931472
    %v481 = vmul.f32 -0.5, %v477
    %v482 = vadd.f32 %v481, 1.0
    %v483 = vmul.f32 %v482, %v477
    %v484 = vand.u32 2147483647, %v477
    %vm485 = vcmp.lt.f32.partialorder %v484, 0.0004427343
    %v486 = vsel %vm485, %v483, %v480
    %v487 = vadd.f32 %v471, %v486
    %v488 = vsel %vm472, %v473, %v487
    %v489 = vsel %vm470, %v488, %v465
    %490 = vst [vmem:[%s8] sm:$0xff] %v489
    // Predicated region
    $region38: #{deepar_forward.1} parent=1 // pred_check
      _
    $region39: #{deepar_forward.1} parent=1 // pred_check_branch
      %492 = sbr.rel (0) target = $region41
    $region40: #{deepar_forward.1} parent=1 // pred_region
      _
    $region41: #{deepar_forward.1} parent=1 // pred_fallthru
      _
    // Predicated region
    $region42: #{deepar_forward.1} parent=1 // pred_check
      _
    $region43: #{deepar_forward.1} parent=1 // pred_check_branch
      %494 = sbr.rel (0) target = $region45
    $region44: #{deepar_forward.1} parent=1 // pred_region
      _
    $region45: #{deepar_forward.1} parent=1 // pred_fallthru
      _
    // Predicated region
    $region46: #{deepar_forward.1} parent=1 // pred_check
      _
    $region47: #{deepar_forward.1} parent=1 // pred_check_branch
      %496 = sbr.rel (0) target = $region49
    $region48: #{deepar_forward.1} parent=1 // pred_region
      _
    $region49: #{deepar_forward.1} parent=1 // pred_fallthru
      _
    // Predicated region
    $region50: #{deepar_forward.1} parent=1 // pred_check
      _
    $region51: #{deepar_forward.1} parent=1 // pred_check_branch
      %498 = sbr.rel (0) target = $region53
    $region52: #{deepar_forward.1} parent=1 // pred_region
      _
    $region53: #{deepar_forward.1} parent=1 // pred_fallthru
      _
    %499 = vsyncpa [#allocation4], 1

</llo_original>
